<compile_context>
chip_gen: v5e
topology: v5e:2x2
jax: 0.10.0
libtpu: 0.0.40
codegen_flags: <defaults>
</compile_context>

<pallas_src>
import jax
import jax.numpy as jnp
from jax import lax
from jax.experimental import pallas as pl
from jax.experimental.pallas import tpu as pltpu

EPS = 1e-5          # nn.InstanceNorm3d default eps
LEAKINESS = 0.01    # leaky_relu negative_slope


def _round_up(x, m):
    return (x + m - 1) // m * m


def _make_kernel(s_true, ts, n_s_tiles):
    """Fused conv-matmul + InstanceNorm3d + LeakyReLU kernel (one batch elem per n)."""
    inv_s = 1.0 / float(s_true)

    def kernel(patches_ref, w_ref, gamma_ref, beta_ref, o_ref,
               conv_sc, sum_sc, ssq_sc):
        # patches_ref: (Kp, TS) bf16        w_ref: (Cp, Kp) bf16
        # gamma_ref/beta_ref: (Cp, 1) f32   o_ref: (Cp, Sp) f32 (resident across s)
        # conv_sc: (nS, Cp, TS) f32         sum_sc/ssq_sc: (Cp, 1) f32
        s = pl.program_id(1)

        @pl.when(s == 0)
        def _init():
            sum_sc[...] = jnp.zeros_like(sum_sc)
            ssq_sc[...] = jnp.zeros_like(ssq_sc)

        # Conv3d as an MXU matmul with S on lanes (bf16 in, f32 accumulate).
        conv = jnp.dot(w_ref[...], patches_ref[...],
                       preferred_element_type=jnp.float32)        # (Cp, TS)

        # One-pass per-(instance, channel) statistics over the spatial axis.
        # Zero-padded S columns contribute 0 (no bias), so dividing by the true
        # S later gives exact statistics.
        sum_sc[...] += jnp.sum(conv, axis=1, keepdims=True)
        ssq_sc[...] += jnp.sum(conv * conv, axis=1, keepdims=True)

        # Stash the raw conv tile (dynamic index on the leading, untiled axis).
        conv_sc[s] = conv

        @pl.when(s == pl.num_programs(1) - 1)
        def _finalize():
            mean = sum_sc[...] * inv_s                            # (Cp, 1)
            var = ssq_sc[...] * inv_s - mean * mean               # biased var
            rstd = lax.rsqrt(var + EPS)
            g = gamma_ref[...]
            b = beta_ref[...]
            for j in range(n_s_tiles):                            # static unroll
                y = g * ((conv_sc[j] - mean) * rstd) + b
                o_ref[:, j * ts:(j + 1) * ts] = jnp.where(
                    y >= 0.0, y, LEAKINESS * y)

        # TODO(synk): InstanceNorm3d(track_running_stats=True) also updates
        # running mean/var buffers as a training side effect; only the forward
        # output (training-mode normalization with instance stats) is produced.

    return kernel


def _extract_patches_kcs(x, k=3, stride=2, pad=1):
    """im2col for 3-D conv, K-major layout. x: (N, C, D, H, W) -> (N, C*k^3, S)."""
    N, C, D, H, W = x.shape
    Do = (D + 2 * pad - k) // stride + 1
    Ho = (H + 2 * pad - k) // stride + 1
    Wo = (W + 2 * pad - k) // stride + 1
    S = Do * Ho * Wo
    xp = jnp.pad(x, ((0, 0), (0, 0), (pad, pad), (pad, pad), (pad, pad)))
    slabs = []
    for kd in range(k):
        for kh in range(k):
            for kw in range(k):
                sl = xp[:, :,
                        kd:kd + stride * Do:stride,
                        kh:kh + stride * Ho:stride,
                        kw:kw + stride * Wo:stride]               # (N, C, Do, Ho, Wo)
                slabs.append(sl.reshape(N, C, S))
    st = jnp.stack(slabs, axis=2)                                 # (N, C, 27, S)
    # K ordering (C-major, then kd,kh,kw) matches torch weight.reshape(C_out, C_in*27)
    return st.reshape(N, C * k * k * k, S), (Do, Ho, Wo)


def downsampling_module_forward(x, weight, bias, gamma, beta, *, s_tile=1024):
    """x: (N, C_in, D, H, W) NCDHW; weight: (C_out, C_in, 3, 3, 3).

    `bias` is accepted for parity with nn.Conv3d(bias=True) but not applied:
    a per-channel constant cancels exactly under the InstanceNorm mean
    subtraction, so dropping it is a free, numerically identical win.
    """
    del bias
    N, C_in, D, H, W = x.shape
    C_out = weight.shape[0]
    K = C_in * 27

    patches, (Do, Ho, Wo) = _extract_patches_kcs(x)               # (N, K, S) f32
    S = Do * Ho * Wo

    Kp = _round_up(K, 128)                                        # lane-aligned contraction
    Cp = _round_up(C_out, 8)                                      # sublane-aligned channels
    ts = min(_round_up(s_tile, 128), _round_up(S, 128))           # S tile (lane dim)
    Sp = _round_up(S, ts)
    n_s = Sp // ts

    patches = jnp.pad(patches, ((0, 0), (0, Kp - K), (0, Sp - S)))
    patches = patches.astype(jnp.bfloat16)

    w = weight.reshape(C_out, K).astype(jnp.float32)
    w = jnp.pad(w, ((0, Cp - C_out), (0, Kp - K))).astype(jnp.bfloat16)
    g = jnp.pad(gamma.astype(jnp.float32), (0, Cp - C_out)).reshape(Cp, 1)
    b = jnp.pad(beta.astype(jnp.float32), (0, Cp - C_out)).reshape(Cp, 1)

    # Scoped-VMEM budget: double-buffered patch tiles + weight + resident output
    # block + conv scratch + epilogue temporaries, with 2x headroom.
    est = (2 * Kp * ts * 2
           + 2 * Cp * Kp * 2
           + 2 * Cp * Sp * 4
           + Cp * Sp * 4
           + 8 * Cp * ts * 4
           + (1 << 20))
    vmem_limit = int(max(32 << 20, min(2 * est, 64 << 20)))

    out = pl.pallas_call(
        _make_kernel(S, ts, n_s),
        out_shape=jax.ShapeDtypeStruct((N, Cp, Sp), jnp.float32),
        grid_spec=pltpu.PrefetchScalarGridSpec(
            num_scalar_prefetch=0,
            grid=(N, n_s),
            in_specs=[
                pl.BlockSpec((None, Kp, ts), lambda n, s: (n, 0, s)),  # patches
                pl.BlockSpec((Cp, Kp), lambda n, s: (0, 0)),           # weight
                pl.BlockSpec((Cp, 1), lambda n, s: (0, 0)),            # gamma
                pl.BlockSpec((Cp, 1), lambda n, s: (0, 0)),            # beta
            ],
            out_specs=pl.BlockSpec((None, Cp, Sp), lambda n, s: (n, 0, 0)),
            scratch_shapes=[
                pltpu.VMEM((n_s, Cp, ts), jnp.float32),   # raw conv tiles
                pltpu.VMEM((Cp, 1), jnp.float32),         # per-channel sum
                pltpu.VMEM((Cp, 1), jnp.float32),         # per-channel sum of squares
            ],
        ),
        compiler_params=pltpu.CompilerParams(
            dimension_semantics=("parallel", "arbitrary"),
            vmem_limit_bytes=vmem_limit,
        ),
    )(patches, w, g, b)

    # (N, Cp, Sp) -> slice padding -> NCDHW directly (no transpose needed).
    return out[:, :C_out, :S].reshape(N, C_out, Do, Ho, Wo)


def _reference(x, weight, bias, gamma, beta):
    conv = lax.conv_general_dilated(
        x, weight, window_strides=(2, 2, 2), padding=[(1, 1)] * 3,
        dimension_numbers=("NCDHW", "OIDHW", "NCDHW"))
    conv = conv + bias.reshape(1, -1, 1, 1, 1)
    mean = jnp.mean(conv, axis=(2, 3, 4), keepdims=True)
    var = jnp.mean((conv - mean) ** 2, axis=(2, 3, 4), keepdims=True)
    xhat = (conv - mean) / jnp.sqrt(var + EPS)
    y = gamma.reshape(1, -1, 1, 1, 1) * xhat + beta.reshape(1, -1, 1, 1, 1)
    return jnp.where(y >= 0, y, LEAKINESS * y)


def _run_case(key, N, C_in, C_out, D, H, W, s_tile):
    kx, kw, kb, kg, kbe = jax.random.split(key, 5)
    x = jax.random.normal(kx, (N, C_in, D, H, W), dtype=jnp.float32)
    fan_in = C_in * 27
    weight = jax.random.normal(kw, (C_out, C_in, 3, 3, 3), dtype=jnp.float32) / jnp.sqrt(fan_in)
    bias = jax.random.normal(kb, (C_out,), dtype=jnp.float32) * 0.1
    gamma = 1.0 + 0.2 * jax.random.normal(kg, (C_out,), dtype=jnp.float32)
    beta = 0.2 * jax.random.normal(kbe, (C_out,), dtype=jnp.float32)

    out = downsampling_module_forward(x, weight, bias, gamma, beta, s_tile=s_tile)
    out = jax.block_until_ready(out)
    ref = _reference(x, weight, bias, gamma, beta)

    assert out.shape == ref.shape, (out.shape, ref.shape)
    # bf16 MXU inputs (f32 accumulation) -> tolerance relaxed vs a pure-f32 reference.
    err = float(jnp.max(jnp.abs(out - ref)))
    assert jnp.allclose(out, ref, atol=3e-2, rtol=3e-2), err


if __name__ == "__main__":
    key = jax.random.PRNGKey(0)
    k1, k2 = jax.random.split(key)
    # Multi-S-tile path (S=216 -> padded 256, 2 tiles of 128) + padded K (108 -> 128).
    _run_case(k1, N=2, C_in=4, C_out=8, D=12, H=12, W=12, s_tile=128)
    # Single-tile path + padded C_out (6 -> 8) + padded K (81 -> 128).
    _run_case(k2, N=1, C_in=3, C_out=6, D=8, H=8, W=8, s_tile=1024)
    print("KERNEL_OK")
</pallas_src>

<mosaic_0001>
module attributes {stable_mosaic.version = 11 : i64} {
  func.func @kernel(%arg0: i32, %arg1: i32, %arg2: memref<1x128x128xbf16, #tpu.memory_space<vmem>>, %arg3: memref<8x128xbf16, #tpu.memory_space<vmem>>, %arg4: memref<8x1xf32, #tpu.memory_space<vmem>>, %arg5: memref<8x1xf32, #tpu.memory_space<vmem>>, %arg6: memref<1x8x256xf32, #tpu.memory_space<vmem>>, %arg7: memref<2x8x128xf32, #tpu.memory_space<vmem>>, %arg8: memref<8x1xf32, #tpu.memory_space<vmem>>, %arg9: memref<8x1xf32, #tpu.memory_space<vmem>>) attributes {dimension_semantics = [#tpu.dimension_semantics<parallel>, #tpu.dimension_semantics<arbitrary>], iteration_bounds = array<i64: 2, 2>, scalar_prefetch = 0 : i64, scratch_operands = 3 : i64, tpu.core_type = #tpu.core_type<tc>, window_params = [{transform_indices = @transform_0, window_bounds = array<i64: 1, 128, 128>}, {pipeline_mode = #tpu.pipeline_mode<synchronous>, transform_indices = @transform_1, window_bounds = array<i64: 8, 128>}, {pipeline_mode = #tpu.pipeline_mode<synchronous>, transform_indices = @transform_2, window_bounds = array<i64: 8, 1>}, {pipeline_mode = #tpu.pipeline_mode<synchronous>, transform_indices = @transform_3, window_bounds = array<i64: 8, 1>}, {transform_indices = @transform_4, window_bounds = array<i64: 1, 8, 256>}]} {
    %c0_i32 = arith.constant 0 : i32
    %0 = arith.cmpi eq, %arg1, %c0_i32 : i32
    %1 = arith.extui %0 : i1 to i32
    %c0_i32_0 = arith.constant 0 : i32
    %2 = arith.cmpi ne, %1, %c0_i32_0 : i32
    scf.if %2 {
      %cst_18 = arith.constant 0.000000e+00 : f32
      %25 = vector.broadcast %cst_18 : f32 to vector<8x1xf32>
      %c0_19 = arith.constant 0 : index
      %c0_20 = arith.constant 0 : index
      %26 = vector.load %arg8[%c0_19, %c0_20] : memref<8x1xf32, #tpu.memory_space<vmem>>, vector<8x1xf32>
      tpu.vector_store %arg8[%c0_19, %c0_20], %25 {strides = array<i32>} : memref<8x1xf32, #tpu.memory_space<vmem>>, vector<8x1xf32>,
      %cst_21 = arith.constant 0.000000e+00 : f32
      %27 = vector.broadcast %cst_21 : f32 to vector<8x1xf32>
      %c0_22 = arith.constant 0 : index
      %c0_23 = arith.constant 0 : index
      %28 = vector.load %arg9[%c0_22, %c0_23] : memref<8x1xf32, #tpu.memory_space<vmem>>, vector<8x1xf32>
      tpu.vector_store %arg9[%c0_22, %c0_23], %27 {strides = array<i32>} : memref<8x1xf32, #tpu.memory_space<vmem>>, vector<8x1xf32>,
    } else {
    }
    %c0 = arith.constant 0 : index
    %c0_1 = arith.constant 0 : index
    %3 = vector.load %arg3[%c0, %c0_1] : memref<8x128xbf16, #tpu.memory_space<vmem>>, vector<8x128xbf16>
    %c0_2 = arith.constant 0 : index
    %c0_3 = arith.constant 0 : index
    %c0_4 = arith.constant 0 : index
    %4 = vector.load %arg2[%c0_2, %c0_3, %c0_4] : memref<1x128x128xbf16, #tpu.memory_space<vmem>>, vector<1x128x128xbf16>
    %5 = vector.shape_cast %4 : vector<1x128x128xbf16> to vector<128x128xbf16>
    %cst = arith.constant dense<0.000000e+00> : vector<8x128xf32>
    %6 = tpu.matmul %3, %5, %cst {dimension_numbers = #tpu.dot_dimension_numbers<[1], [0], [0], [1], [0, 0, 1, 1], [], []>} : vector<8x128xbf16>, vector<128x128xbf16>, vector<8x128xf32> -> vector<8x128xf32>
    %c0_5 = arith.constant 0 : index
    %c0_6 = arith.constant 0 : index
    %7 = vector.load %arg8[%c0_5, %c0_6] : memref<8x1xf32, #tpu.memory_space<vmem>>, vector<8x1xf32>
    %cst_7 = arith.constant dense<0.000000e+00> : vector<8xf32>
    %8 = vector.multi_reduction <add>, %6, %cst_7 [1] : vector<8x128xf32> to vector<8xf32>
    %9 = vector.shape_cast %8 : vector<8xf32> to vector<8x1xf32>
    %10 = arith.addf %7, %9 : vector<8x1xf32>
    %c0_8 = arith.constant 0 : index
    %c0_9 = arith.constant 0 : index
    %11 = vector.load %arg8[%c0_8, %c0_9] : memref<8x1xf32, #tpu.memory_space<vmem>>, vector<8x1xf32>
    tpu.vector_store %arg8[%c0_8, %c0_9], %10 {strides = array<i32>} : memref<8x1xf32, #tpu.memory_space<vmem>>, vector<8x1xf32>,
    %c0_10 = arith.constant 0 : index
    %c0_11 = arith.constant 0 : index
    %12 = vector.load %arg9[%c0_10, %c0_11] : memref<8x1xf32, #tpu.memory_space<vmem>>, vector<8x1xf32>
    %13 = arith.mulf %6, %6 : vector<8x128xf32>
    %cst_12 = arith.constant dense<0.000000e+00> : vector<8xf32>
    %14 = vector.multi_reduction <add>, %13, %cst_12 [1] : vector<8x128xf32> to vector<8xf32>
    %15 = vector.shape_cast %14 : vector<8xf32> to vector<8x1xf32>
    %16 = arith.addf %12, %15 : vector<8x1xf32>
    %c0_13 = arith.constant 0 : index
    %c0_14 = arith.constant 0 : index
    %17 = vector.load %arg9[%c0_13, %c0_14] : memref<8x1xf32, #tpu.memory_space<vmem>>, vector<8x1xf32>
    tpu.vector_store %arg9[%c0_13, %c0_14], %16 {strides = array<i32>} : memref<8x1xf32, #tpu.memory_space<vmem>>, vector<8x1xf32>,
    %18 = arith.index_cast %arg1 : i32 to index
    %c0_15 = arith.constant 0 : index
    %c0_16 = arith.constant 0 : index
    %19 = vector.load %arg7[%18, %c0_15, %c0_16] : memref<2x8x128xf32, #tpu.memory_space<vmem>>, vector<1x8x128xf32>
    %20 = vector.shape_cast %19 : vector<1x8x128xf32> to vector<8x128xf32>
    %21 = vector.shape_cast %6 : vector<8x128xf32> to vector<1x8x128xf32>
    tpu.vector_store %arg7[%18, %c0_15, %c0_16], %21 {strides = array<i32>} : memref<2x8x128xf32, #tpu.memory_space<vmem>>, vector<1x8x128xf32>,
    %c1_i32 = arith.constant 1 : i32
    %22 = arith.cmpi eq, %arg1, %c1_i32 : i32
    %23 = arith.extui %22 : i1 to i32
    %c0_i32_17 = arith.constant 0 : i32
    %24 = arith.cmpi ne, %23, %c0_i32_17 : i32
    scf.if %24 {
      %c0_18 = arith.constant 0 : index
      %c0_19 = arith.constant 0 : index
      %25 = vector.load %arg8[%c0_18, %c0_19] : memref<8x1xf32, #tpu.memory_space<vmem>>, vector<8x1xf32>
      %cst_20 = arith.constant 0.00462962966 : f32
      %26 = vector.broadcast %cst_20 : f32 to vector<8x1xf32>
      %27 = arith.mulf %25, %26 : vector<8x1xf32>
      %c0_21 = arith.constant 0 : index
      %c0_22 = arith.constant 0 : index
      %28 = vector.load %arg9[%c0_21, %c0_22] : memref<8x1xf32, #tpu.memory_space<vmem>>, vector<8x1xf32>
      %cst_23 = arith.constant 0.00462962966 : f32
      %29 = vector.broadcast %cst_23 : f32 to vector<8x1xf32>
      %30 = arith.mulf %28, %29 : vector<8x1xf32>
      %31 = arith.mulf %27, %27 : vector<8x1xf32>
      %32 = arith.subf %30, %31 : vector<8x1xf32>
      %cst_24 = arith.constant 9.99999974E-6 : f32
      %33 = vector.broadcast %cst_24 : f32 to vector<8x1xf32>
      %34 = arith.addf %32, %33 : vector<8x1xf32>
      %35 = math.rsqrt %34 : vector<8x1xf32>
      %c0_25 = arith.constant 0 : index
      %c0_26 = arith.constant 0 : index
      %36 = vector.load %arg4[%c0_25, %c0_26] : memref<8x1xf32, #tpu.memory_space<vmem>>, vector<8x1xf32>
      %c0_27 = arith.constant 0 : index
      %c0_28 = arith.constant 0 : index
      %37 = vector.load %arg5[%c0_27, %c0_28] : memref<8x1xf32, #tpu.memory_space<vmem>>, vector<8x1xf32>
      %c0_29 = arith.constant 0 : index
      %c0_30 = arith.constant 0 : index
      %c0_31 = arith.constant 0 : index
      %38 = vector.load %arg7[%c0_29, %c0_30, %c0_31] : memref<2x8x128xf32, #tpu.memory_space<vmem>>, vector<1x8x128xf32>
      %39 = vector.shape_cast %38 : vector<1x8x128xf32> to vector<8x128xf32>
      %40 = vector.broadcast %27 : vector<8x1xf32> to vector<8x128xf32>
      %41 = arith.subf %39, %40 : vector<8x128xf32>
      %42 = vector.broadcast %35 : vector<8x1xf32> to vector<8x128xf32>
      %43 = arith.mulf %41, %42 : vector<8x128xf32>
      %44 = vector.broadcast %36 : vector<8x1xf32> to vector<8x128xf32>
      %45 = arith.mulf %44, %43 : vector<8x128xf32>
      %46 = vector.broadcast %37 : vector<8x1xf32> to vector<8x128xf32>
      %47 = arith.addf %45, %46 : vector<8x128xf32>
      %cst_32 = arith.constant 0.000000e+00 : f32
      %48 = vector.broadcast %cst_32 : f32 to vector<8x128xf32>
      %49 = arith.cmpf oge, %47, %48 : vector<8x128xf32>
      %cst_33 = arith.constant 0.00999999977 : f32
      %50 = vector.broadcast %cst_33 : f32 to vector<8x128xf32>
      %51 = arith.mulf %50, %47 : vector<8x128xf32>
      %52 = arith.select %49, %47, %51 : vector<8x128xi1>, vector<8x128xf32>
      %c0_34 = arith.constant 0 : index
      %c0_35 = arith.constant 0 : index
      %c0_36 = arith.constant 0 : index
      %53 = vector.load %arg6[%c0_34, %c0_35, %c0_36] : memref<1x8x256xf32, #tpu.memory_space<vmem>>, vector<1x8x128xf32>
      %54 = vector.shape_cast %53 : vector<1x8x128xf32> to vector<8x128xf32>
      %55 = vector.shape_cast %52 : vector<8x128xf32> to vector<1x8x128xf32>
      tpu.vector_store %arg6[%c0_34, %c0_35, %c0_36], %55 {strides = array<i32>} : memref<1x8x256xf32, #tpu.memory_space<vmem>>, vector<1x8x128xf32>,
      %c1 = arith.constant 1 : index
      %c0_37 = arith.constant 0 : index
      %c0_38 = arith.constant 0 : index
      %56 = vector.load %arg7[%c1, %c0_37, %c0_38] : memref<2x8x128xf32, #tpu.memory_space<vmem>>, vector<1x8x128xf32>
      %57 = vector.shape_cast %56 : vector<1x8x128xf32> to vector<8x128xf32>
      %58 = vector.broadcast %27 : vector<8x1xf32> to vector<8x128xf32>
      %59 = arith.subf %57, %58 : vector<8x128xf32>
      %60 = vector.broadcast %35 : vector<8x1xf32> to vector<8x128xf32>
      %61 = arith.mulf %59, %60 : vector<8x128xf32>
      %62 = vector.broadcast %36 : vector<8x1xf32> to vector<8x128xf32>
      %63 = arith.mulf %62, %61 : vector<8x128xf32>
      %64 = vector.broadcast %37 : vector<8x1xf32> to vector<8x128xf32>
      %65 = arith.addf %63, %64 : vector<8x128xf32>
      %cst_39 = arith.constant 0.000000e+00 : f32
      %66 = vector.broadcast %cst_39 : f32 to vector<8x128xf32>
      %67 = arith.cmpf oge, %65, %66 : vector<8x128xf32>
      %cst_40 = arith.constant 0.00999999977 : f32
      %68 = vector.broadcast %cst_40 : f32 to vector<8x128xf32>
      %69 = arith.mulf %68, %65 : vector<8x128xf32>
      %70 = arith.select %67, %65, %69 : vector<8x128xi1>, vector<8x128xf32>
      %c0_41 = arith.constant 0 : index
      %c0_42 = arith.constant 0 : index
      %c128 = arith.constant 128 : index
      %71 = vector.load %arg6[%c0_41, %c0_42, %c128] : memref<1x8x256xf32, #tpu.memory_space<vmem>>, vector<1x8x128xf32>
      %72 = vector.shape_cast %71 : vector<1x8x128xf32> to vector<8x128xf32>
      %73 = vector.shape_cast %70 : vector<8x128xf32> to vector<1x8x128xf32>
      tpu.vector_store %arg6[%c0_41, %c0_42, %c128], %73 {strides = array<i32>} : memref<1x8x256xf32, #tpu.memory_space<vmem>>, vector<1x8x128xf32>,
    } else {
    }
    return
  }
  func.func @transform_0(%arg0: i32, %arg1: i32) -> (i32, i32, i32) {
    %c0_i32 = arith.constant 0 : i32
    %c0_i32_0 = arith.constant 0 : i32
    return %arg0, %c0_i32, %arg1 : i32, i32, i32
  }
  func.func @transform_1(%arg0: i32, %arg1: i32) -> (i32, i32) {
    %c0_i32 = arith.constant 0 : i32
    %c0_i32_0 = arith.constant 0 : i32
    %c0_i32_1 = arith.constant 0 : i32
    return %c0_i32, %c0_i32_0 : i32, i32
  }
  func.func @transform_2(%arg0: i32, %arg1: i32) -> (i32, i32) {
    %c0_i32 = arith.constant 0 : i32
    %c0_i32_0 = arith.constant 0 : i32
    %c0_i32_1 = arith.constant 0 : i32
    return %c0_i32, %c0_i32_0 : i32, i32
  }
  func.func @transform_3(%arg0: i32, %arg1: i32) -> (i32, i32) {
    %c0_i32 = arith.constant 0 : i32
    %c0_i32_0 = arith.constant 0 : i32
    %c0_i32_1 = arith.constant 0 : i32
    return %c0_i32, %c0_i32_0 : i32, i32
  }
  func.func @transform_4(%arg0: i32, %arg1: i32) -> (i32, i32, i32) {
    %c0_i32 = arith.constant 0 : i32
    %c0_i32_0 = arith.constant 0 : i32
    %c0_i32_1 = arith.constant 0 : i32
    return %arg0, %c0_i32, %c0_i32_0 : i32, i32, i32
  }
}

</mosaic_0001>

<llo_original>
// kernel: tpu_custom_call.1
$region0: #{tpu_custom_call.1}
  #allocation0 [shape = 'u32[]', space=smem, size = 0x4, offset = 0x4, fixed_abs, tag = 'smem constant byte address 0x4 - core index']
  #allocation1 [shape = 'u32[72,128]{1,0:T(1,128)}', space=vmem, size = 0x9000, scoped, tag = 'internal scratch']
  #allocation2 [shape = 'f32[2,8,128]{2,1,0:T(8,128)}', space=vmem, size = 0x2000, scoped, tag = 'scratch operand']
  #allocation3 [shape = 'f32[8,1]{1,0:T(8,128)}', space=vmem, size = 0x1000, scoped, tag = 'scratch operand']
  #allocation4 [shape = 'f32[8,1]{1,0:T(8,128)}', space=vmem, size = 0x1000, scoped, tag = 'scratch operand']
  %s0 = inlined_call_operand.hbm [shape: bf16[2,128,256], index: 0, kind: input, shape index: {}]
  %s1 = inlined_call_operand.vmem [shape: bf16[8,128], index: 1, kind: input, shape index: {}]
  %s2 = inlined_call_operand.vmem [shape: f32[8,1], index: 2, kind: input, shape index: {}]
  %s3 = inlined_call_operand.vmem [shape: f32[8,1], index: 3, kind: input, shape index: {}]
  %s4 = inlined_call_operand.hbm [shape: f32[2,8,256], index: 4, kind: output, shape index: {}]
  %s5 = sld [smem:[#allocation0]]
  $region61: #{tpu_custom_call.1} parent=0
    _
  %s7 = ssub.s32 1, %s5
  %s8 = scalar_select 0, %s7, %s5
  $region1: #{tpu_custom_call.1} parent=0
    #allocation5 [shape = 'u8[65536]{0}', space=vmem, size = 0x10000, scoped, tag = 'input window, operand 0']
    #allocation6 [shape = 's32[2]{0}', space=sflag, size = 0x8, scoped, tag = 'scoped memory for tpu_custom_call.1']
    #allocation7 [shape = 's32[2]{0}', space=sflag, size = 0x8, scoped, tag = 'scoped memory for tpu_custom_call.1']
    #allocation8 [shape = 'u8[16384]{0}', space=vmem, size = 0x4000, scoped, tag = 'output window, operand 0']
    %9 = vsyncpa [#allocation6], 0
    %s10 = scalar_lea.sflag [#allocation6], 1
    %11 = vsyncpa %s10, 0
    %12 = vsyncpa [#allocation7], 0
    %s13 = scalar_lea.sflag [#allocation7], 1
    %14 = vsyncpa %s13, 0
    loop: start=0, step=1, limit=6
    $region2: #{tpu_custom_call.1} parent=1 // loop_pre_header
      _
    $region3: #{tpu_custom_call.1} parent=1 // loop_header
      %s16 = sphi 0, %s20
      %p17 = scmp.ge.s32.totalorder %s16, 6
      %s23 = sphi 0, %s35
      %s24 = sphi 0, %s31
      %s25 = sphi 0, %s23
      %s26 = sphi 0, %s24
      %s27 = sphi 0, %s25
      %s28 = sphi 0, %s26
      %s40 = sphi 0, %s42
      %s43 = sphi 0, %s40
      %s44 = sphi 0, %s43
      %s60 = sphi 0, %s44
      %s64 = sphi 0, %s64
      %s66 = sphi 0, %s64
      %s67 = sphi 0, %s66
      %s81 = sphi 0, %s67
      %s85 = sphi 0, %s85
      %s87 = sphi 0, %s85
      %s88 = sphi 0, %s87
      %s102 = sphi 0, %s88
      %s106 = sphi 0, %s106
      %s108 = sphi 0, %s106
      %s109 = sphi 0, %s108
      %s123 = sphi 0, %s109
      %s129 = sphi 0, %s131
      %s132 = sphi 0, %s129
      %s133 = sphi 0, %s132
      %s149 = sphi 0, %s133
    $region4: #{tpu_custom_call.1} parent=1 // loop_header_branch
      %19 = sbr.rel (%p17) target = $region8
    $region5: #{tpu_custom_call.1} parent=1 // loop_body
      %s21 = ssub.s32 %s16, 1
      %s22 = ssub.s32 %s16, 2
      %s29 = sadd.s32 1, %s24
      %p30 = scmp.ge.s32.totalorder %s29, 2
      %s31 = scalar_select %p30, 0, %s29
      %s32 = sadd.s32 1, %s23
      %s33 = scalar_select %p30, %s32, %s23
      %p34 = scmp.ge.s32.totalorder %s33, 2
      %s35 = scalar_select %p34, 0, %s33
      %s36 = ssub.s32 %s23, %s35
      %s37 = ssub.s32 %s24, %s31
      %s38 = sor.u32 %s36, %s37
      %p39 = scmp.eq.s32.totalorder %s38, 0
      %s41 = sadd.s32 %s40, 1
      %s42 = scalar_select %p39, %s40, %s41
      %p45 = pneg %p39
      %p46 = scmp.eq.s32.totalorder %s16, 3
      %p47 = por %p45, %p46
      %p48 = scmp.ne.s32.totalorder %s40, %s43
      %p49 = scmp.eq.s32.totalorder %s16, 0
      %p50 = por %p48, %p49
      %p51 = scmp.ne.s32.totalorder %s40, %s43
      %p52 = scmp.eq.s32.totalorder %s21, 3
      %p53 = por %p51, %p52
      %p54 = scmp.ne.s32.totalorder %s43, %s44
      %p55 = scmp.eq.s32.totalorder %s21, 0
      %p56 = por %p54, %p55
      %p57 = scmp.ne.s32.totalorder %s43, %s44
      %p58 = scmp.eq.s32.totalorder %s22, 3
      %p59 = por %p57, %p58
      %p61 = scmp.ne.s32.totalorder %s44, %s60
      %p62 = scmp.eq.s32.totalorder %s22, 0
      %p63 = por %p61, %p62
      %s65 = sadd.s32 %s64, 1
      %p68 = scmp.eq.s32.totalorder %s16, 3
      %p69 = scmp.ne.s32.totalorder %s64, %s66
      %p70 = scmp.eq.s32.totalorder %s16, 0
      %p71 = por %p69, %p70
      %p72 = scmp.ne.s32.totalorder %s64, %s66
      %p73 = scmp.eq.s32.totalorder %s21, 3
      %p74 = por %p72, %p73
      %p75 = scmp.ne.s32.totalorder %s66, %s67
      %p76 = scmp.eq.s32.totalorder %s21, 0
      %p77 = por %p75, %p76
      %p78 = scmp.ne.s32.totalorder %s66, %s67
      %p79 = scmp.eq.s32.totalorder %s22, 3
      %p80 = por %p78, %p79
      %p82 = scmp.ne.s32.totalorder %s67, %s81
      %p83 = scmp.eq.s32.totalorder %s22, 0
      %p84 = por %p82, %p83
      %s86 = sadd.s32 %s85, 1
      %p89 = scmp.eq.s32.totalorder %s16, 3
      %p90 = scmp.ne.s32.totalorder %s85, %s87
      %p91 = scmp.eq.s32.totalorder %s16, 0
      %p92 = por %p90, %p91
      %p93 = scmp.ne.s32.totalorder %s85, %s87
      %p94 = scmp.eq.s32.totalorder %s21, 3
      %p95 = por %p93, %p94
      %p96 = scmp.ne.s32.totalorder %s87, %s88
      %p97 = scmp.eq.s32.totalorder %s21, 0
      %p98 = por %p96, %p97
      %p99 = scmp.ne.s32.totalorder %s87, %s88
      %p100 = scmp.eq.s32.totalorder %s22, 3
      %p101 = por %p99, %p100
      %p103 = scmp.ne.s32.totalorder %s88, %s102
      %p104 = scmp.eq.s32.totalorder %s22, 0
      %p105 = por %p103, %p104
      %s107 = sadd.s32 %s106, 1
      %p110 = scmp.eq.s32.totalorder %s16, 3
      %p111 = scmp.ne.s32.totalorder %s106, %s108
      %p112 = scmp.eq.s32.totalorder %s16, 0
      %p113 = por %p111, %p112
      %p114 = scmp.ne.s32.totalorder %s106, %s108
      %p115 = scmp.eq.s32.totalorder %s21, 3
      %p116 = por %p114, %p115
      %p117 = scmp.ne.s32.totalorder %s108, %s109
      %p118 = scmp.eq.s32.totalorder %s21, 0
      %p119 = por %p117, %p118
      %p120 = scmp.ne.s32.totalorder %s108, %s109
      %p121 = scmp.eq.s32.totalorder %s22, 3
      %p122 = por %p120, %p121
      %p124 = scmp.ne.s32.totalorder %s109, %s123
      %p125 = scmp.eq.s32.totalorder %s22, 0
      %p126 = por %p124, %p125
      %s127 = ssub.s32 %s23, %s35
      %p128 = scmp.eq.s32.totalorder %s127, 0
      %s130 = sadd.s32 %s129, 1
      %s131 = scalar_select %p128, %s129, %s130
      %p134 = pneg %p128
      %p135 = scmp.eq.s32.totalorder %s16, 3
      %p136 = por %p134, %p135
      %p137 = scmp.ne.s32.totalorder %s129, %s132
      %p138 = scmp.eq.s32.totalorder %s16, 0
      %p139 = por %p137, %p138
      %p140 = scmp.ne.s32.totalorder %s129, %s132
      %p141 = scmp.eq.s32.totalorder %s21, 3
      %p142 = por %p140, %p141
      %p143 = scmp.ne.s32.totalorder %s132, %s133
      %p144 = scmp.eq.s32.totalorder %s21, 0
      %p145 = por %p143, %p144
      %p146 = scmp.ne.s32.totalorder %s132, %s133
      %p147 = scmp.eq.s32.totalorder %s22, 3
      %p148 = por %p146, %p147
      %p150 = scmp.ne.s32.totalorder %s133, %s149
      %p151 = scmp.eq.s32.totalorder %s22, 0
      %p152 = por %p150, %p151
      %p153 = scmp.le.s32.totalorder 1, %s16
      %p154 = scmp.lt.s32.totalorder %s16, 5
      %p155 = pnand %p153, %p154
      %p156 = pneg %p155
      // Predicated region
      $region9: #{tpu_custom_call.1} parent=5 // pred_check
        _
      $region10: #{tpu_custom_call.1} parent=5 // pred_check_branch
        %158 = sbr.rel (%p155) target = $region12
      $region11: #{tpu_custom_call.1} parent=5 // pred_region
        %s159 = ssub.s32 %s16, 1
        // Predicated region
        $region13: #{tpu_custom_call.1} parent=11 // pred_check
          %p160 = pneg %p77
        $region14: #{tpu_custom_call.1} parent=11 // pred_check_branch
          %162 = sbr.rel (%p160) target = $region16
        $region15: #{tpu_custom_call.1} parent=11 // pred_region
          _
        $region16: #{tpu_custom_call.1} parent=11 // pred_fallthru
          _
        // Predicated region
        $region17: #{tpu_custom_call.1} parent=11 // pred_check
          %p163 = pneg %p98
        $region18: #{tpu_custom_call.1} parent=11 // pred_check_branch
          %165 = sbr.rel (%p163) target = $region20
        $region19: #{tpu_custom_call.1} parent=11 // pred_region
          _
        $region20: #{tpu_custom_call.1} parent=11 // pred_fallthru
          _
        // Predicated region
        $region21: #{tpu_custom_call.1} parent=11 // pred_check
          %p166 = pneg %p119
        $region22: #{tpu_custom_call.1} parent=11 // pred_check_branch
          %168 = sbr.rel (%p166) target = $region24
        $region23: #{tpu_custom_call.1} parent=11 // pred_region
          _
        $region24: #{tpu_custom_call.1} parent=11 // pred_fallthru
          _
      $region12: #{tpu_custom_call.1} parent=5 // pred_fallthru
        _
      %p169 = scmp.lt.s32.totalorder %s16, 4
      // Predicated region
      $region25: #{tpu_custom_call.1} parent=5 // pred_check
        %p170 = pneg %p169
      $region26: #{tpu_custom_call.1} parent=5 // pred_check_branch
        %172 = sbr.rel (%p170) target = $region28
      $region27: #{tpu_custom_call.1} parent=5 // pred_region
        // Predicated region
        $region29: #{tpu_custom_call.1} parent=27 // pred_check
          %p173 = pneg %p50
        $region30: #{tpu_custom_call.1} parent=27 // pred_check_branch
          %175 = sbr.rel (%p173) target = $region32
        $region31: #{tpu_custom_call.1} parent=27 // pred_region
          %s176 = sand.u32 %s40, 1
          %s177 = scalar_lea.sflag [#allocation6], %s176
          %s178 = sand.u32 %s40, 1
          %s179 = smul.addr %s178, 64
          %s180 = scalar_lea.vmem [#allocation5], %s179
          %182 = vsyncadd %s177, 0
          %s183 = smul.addr %s23, 32
          %s184 = sadd.s32 %s24, %s183
          %s185 = smul.addr %s184, 4
          %s186 = scalar_lea.hbm %s0, %s185
          %s187 = sshll.u32 %s186, 4
          %s188 = int_to_ptr.hbm [resolvable:$true] %s187
          %s189 = sshll.u32 %s180, 4
          %s190 = int_to_ptr.vmem [resolvable:$true] %s189
          %195 = dma.hbm_to_vmem [thread:$0]  %s188, 1024, %s190, %s177, 128, 64, 4
        $region32: #{tpu_custom_call.1} parent=27 // pred_fallthru
          _
      $region28: #{tpu_custom_call.1} parent=5 // pred_fallthru
        _
      %p196 = scmp.le.s32.totalorder 1, %s16
      %p197 = scmp.lt.s32.totalorder %s16, 5
      %p198 = pnand %p196, %p197
      %p199 = pneg %p198
      // Predicated region
      $region33: #{tpu_custom_call.1} parent=5 // pred_check
        _
      $region34: #{tpu_custom_call.1} parent=5 // pred_check_branch
        %201 = sbr.rel (%p198) target = $region36
      $region35: #{tpu_custom_call.1} parent=5 // pred_region
        %s202 = ssub.s32 %s16, 1
        %s203 = sand.u32 %s43, 1
        %s204 = scalar_lea.sflag [#allocation6], %s203
        %s205 = sand.u32 %s43, 1
        %s206 = smul.addr %s205, 64
        %s207 = scalar_lea.vmem [#allocation5], %s206
        // Predicated region
        $region37: #{tpu_custom_call.1} parent=35 // pred_check
          %p208 = pneg %p56
        $region38: #{tpu_custom_call.1} parent=35 // pred_check_branch
          %210 = sbr.rel (%p208) target = $region40
        $region39: #{tpu_custom_call.1} parent=35 // pred_region
          %212 = dma.done %s204, 1024
        $region40: #{tpu_custom_call.1} parent=35 // pred_fallthru
          _
        %s213 = sand.u32 %s43, 1
        %s214 = scalar_lea.sflag [#allocation6], %s213
        %s215 = sand.u32 %s43, 1
        %s216 = smul.addr %s215, 64
        %s217 = scalar_lea.vmem [#allocation5], %s216
        %p218 = pneg %p56
        %p219 = pneg %p53
        %p220 = pneg %p77
        %p221 = pneg %p74
        %p222 = pneg %p98
        %p223 = pneg %p95
        %p224 = pneg %p119
        %p225 = pneg %p116
        %p226 = pneg %p145
        %p227 = pneg %p142
        %s228 = sand.u32 %s132, 1
        %s229 = scalar_lea.sflag [#allocation7], %s228
        %s230 = sand.u32 %s132, 1
        %s231 = smul.addr %s230, 16
        %s232 = scalar_lea.vmem [#allocation8], %s231
        %p233 = scmp.eq.s32.totalorder %s26, 0
        // Predicated region
        $region41: #{tpu_custom_call.1} parent=35 // pred_check
          %p234 = pneg %p233
        $region42: #{tpu_custom_call.1} parent=35 // pred_check_branch
          %236 = sbr.rel (%p234) target = $region44
        $region43: #{tpu_custom_call.1} parent=35 // pred_region
          %vm237 = vcmask 7168
          %238 = vst.msk [vmem:[#allocation3] sm:$0xff] %vm237, 0.0
          %239 = vst.msk [vmem:[#allocation4] sm:$0xff] %vm237, 0.0
        $region44: #{tpu_custom_call.1} parent=35 // pred_fallthru
          _
        %v240 = vld [vmem:[%s1] sm:$0xf]
        %v241 = vld [vmem:[%s207] sm:$0xf]
        %v242 = vld [vmem:[%s207 + $0x4] sm:$0xf]
        %v243 = vld [vmem:[%s207 + $0x8] sm:$0xf]
        %v244 = vld [vmem:[%s207 + $0xc] sm:$0xf]
        %v245 = vld [vmem:[%s207 + $0x10] sm:$0xf]
        %v246 = vld [vmem:[%s207 + $0x14] sm:$0xf]
        %v247 = vld [vmem:[%s207 + $0x18] sm:$0xf]
        %v248 = vld [vmem:[%s207 + $0x1c] sm:$0xf]
        %v249 = vld [vmem:[%s207 + $0x20] sm:$0xf]
        %v250 = vld [vmem:[%s207 + $0x24] sm:$0xf]
        %v251 = vld [vmem:[%s207 + $0x28] sm:$0xf]
        %v252 = vld [vmem:[%s207 + $0x2c] sm:$0xf]
        %v253 = vld [vmem:[%s207 + $0x30] sm:$0xf]
        %v254 = vld [vmem:[%s207 + $0x34] sm:$0xf]
        %v255 = vld [vmem:[%s207 + $0x38] sm:$0xf]
        %v256 = vld [vmem:[%s207 + $0x3c] sm:$0xf]
        %v273 = vunpack.c.l.b16 %v241
        %v274 = vunpack.c.l.b16 %v242
        %v275 = vunpack.c.l.b16 %v243
        %v276 = vunpack.c.l.b16 %v244
        %v277 = vunpack.c.l.b16 %v245
        %v278 = vunpack.c.l.b16 %v246
        %v279 = vunpack.c.l.b16 %v247
        %v280 = vunpack.c.l.b16 %v248
        %v281 = vunpack.c.l.b16 %v249
        %v282 = vunpack.c.l.b16 %v250
        %v283 = vunpack.c.l.b16 %v251
        %v284 = vunpack.c.l.b16 %v252
        %v285 = vunpack.c.l.b16 %v253
        %v286 = vunpack.c.l.b16 %v254
        %v287 = vunpack.c.l.b16 %v255
        %v288 = vunpack.c.l.b16 %v256
        %v289 = vpack.c.b16 %v274, %v273
        %v290 = vpack.c.b16 %v276, %v275
        %v291 = vpack.c.b16 %v278, %v277
        %v292 = vpack.c.b16 %v280, %v279
        %v293 = vpack.c.b16 %v282, %v281
        %v294 = vpack.c.b16 %v284, %v283
        %v295 = vpack.c.b16 %v286, %v285
        %v296 = vpack.c.b16 %v288, %v287
        %305 = vmatpush.bf16.msra.mxu0 %v296
        %306 = vmatpush.bf16.msra.mxu0 %v295
        %307 = vmatpush.bf16.msra.mxu0 %v294
        %308 = vmatpush.bf16.msra.mxu0 %v293
        %309 = vmatpush.bf16.msra.mxu0 %v292
        %310 = vmatpush.bf16.msra.mxu0 %v291
        %311 = vmatpush.bf16.msra.mxu0 %v290
        %312 = vmatpush.bf16.msra.mxu0 %v289
        %313 = vmatmul.bf16.gmra.mxu0 %v240
        %v314 = vpop.f32.mrf.mxu0
        %v315 = vadd.f32 0.0, %v314
        %v316 = vpop.f32.mrf.mxu0
        %317 = vdwg.mxu0
        %v318 = vld [vmem:[#allocation3] sm:$0xff]
        %319 = vadd.xlane.f32.xlu0 %v315
        %v320 = vpop.xlane.xlu0 %319
        %v321 = vadd.f32 %v318, %v320
        %vm322 = vcmask 7168
        %323 = vst.msk [vmem:[#allocation3] sm:$0xff] %vm322, %v321
        %v324 = vld [vmem:[#allocation4] sm:$0xff]
        %v325 = vmul.f32 %v315, %v315
        %326 = vadd.xlane.f32.xlu0 %v325
        %v327 = vpop.xlane.xlu0 %326
        %v328 = vadd.f32 %v324, %v327
        %329 = vst.msk [vmem:[#allocation4] sm:$0xff] %vm322, %v328
        %s330 = smul.u32 %s26, 8
        %s331 = scalar_lea.vmem [#allocation2], %s330
        %332 = vst [vmem:[%s331] sm:$0xff] %v315
        %p333 = scmp.eq.s32.totalorder %s26, 1
        // Predicated region
        $region45: #{tpu_custom_call.1} parent=35 // pred_check
          %p334 = pneg %p333
        $region46: #{tpu_custom_call.1} parent=35 // pred_check_branch
          %336 = sbr.rel (%p334) target = $region48
        $region47: #{tpu_custom_call.1} parent=35 // pred_region
          %v337 = vld [vmem:[#allocation3] sm:$0xff]
          %v338 = vmul.f32 %v337, 0.0046296297
          %v339 = vld [vmem:[#allocation4] sm:$0xff]
          %v340 = vmul.f32 %v339, 0.0046296297
          %v341 = vmul.f32 %v338, %v338
          %v342 = vsub.f32 %v340, %v341
          %v343 = vadd.f32 %v342, 1e-05
          %v344 = vrsqrt.pop %v343
          %v345 = vmul.f32 %v344, %v343
          %v346 = vmul.f32 %v345, %v344
          %v347 = vmul.f32 0.5, %v346
          %v348 = vsub.f32 1.5, %v347
          %v349 = vmul.f32 %v344, %v348
          %vm350 = vweird.f32 %v343
          %vm351 = vweird.f32 %v344
          %vm352 = vmor %vm350, %vm351
          %v353 = vsel %vm352, %v344, %v349
          %v354 = vld [vmem:[%s2] sm:$0xff]
          %v355 = vld [vmem:[%s3] sm:$0xff]
          %v356 = vld [vmem:[#allocation2] sm:$0xff]
          %358 = vset.pattern.permute.xlu0 0
          %359 = vperm.xlu0 %358, %v338
          %v360 = vpop.permute.xlu0 %359
          %v362 = vsub.f32 %v356, %v360
          %364 = vset.pattern.permute.xlu0 0
          %365 = vperm.xlu0 %364, %v353
          %v366 = vpop.permute.xlu0 %365
          %v368 = vmul.f32 %v362, %v366
          %370 = vset.pattern.permute.xlu0 0
          %371 = vperm.xlu0 %370, %v354
          %v372 = vpop.permute.xlu0 %371
          %v374 = vmul.f32 %v372, %v368
          %376 = vset.pattern.permute.xlu0 0
          %377 = vperm.xlu0 %376, %v355
          %v378 = vpop.permute.xlu0 %377
          %v380 = vadd.f32 %v374, %v378
          %vm381 = vcmp.ge.f32.partialorder %v380, 0.0
          %v382 = vmul.f32 %v380, 0.01
          %v383 = vsel %vm381, %v380, %v382
          %384 = vst [vmem:[%s232] sm:$0xff] %v383
          %s385 = scalar_lea.vmem [#allocation2], 8
          %v386 = vld [vmem:[%s385] sm:$0xff]
          %v387 = vsub.f32 %v386, %v360
          %v388 = vmul.f32 %v387, %v366
          %v389 = vmul.f32 %v372, %v388
          %v390 = vadd.f32 %v389, %v378
          %vm391 = vcmp.ge.f32.partialorder %v390, 0.0
          %v392 = vmul.f32 %v390, 0.01
          %v393 = vsel %vm391, %v390, %v392
          %394 = vst [vmem:[%s232 + $0x8] sm:$0xff] %v393
        $region48: #{tpu_custom_call.1} parent=35 // pred_fallthru
          _
        %s395 = sand.u32 %s132, 1
        %s396 = scalar_lea.sflag [#allocation7], %s395
        %s397 = sand.u32 %s132, 1
        %s398 = smul.addr %s397, 16
        %s399 = scalar_lea.vmem [#allocation8], %s398
        // Predicated region
        $region49: #{tpu_custom_call.1} parent=35 // pred_check
          %p400 = pneg %p142
        $region50: #{tpu_custom_call.1} parent=35 // pred_check_branch
          %402 = sbr.rel (%p400) target = $region52
        $region51: #{tpu_custom_call.1} parent=35 // pred_region
          %404 = vsyncadd %s396, 0
          %s405 = smul.addr %s25, 2
          %s406 = smul.addr %s405, 8
          %s407 = scalar_lea.hbm %s4, %s406
          %s409 = sshll.u32 %s399, 4
          %s410 = int_to_ptr.vmem [resolvable:$true] %s409
          %s411 = sshll.u32 %s407, 4
          %s412 = int_to_ptr.hbm [resolvable:$true] %s411
          %414 = dma.vmem_to_hbm [thread:$0]  %s410, 256, %s412, %s396
        $region52: #{tpu_custom_call.1} parent=35 // pred_fallthru
          _
      $region36: #{tpu_custom_call.1} parent=5 // pred_fallthru
        _
      %p415 = scmp.le.s32.totalorder 2, %s16
      // Predicated region
      $region53: #{tpu_custom_call.1} parent=5 // pred_check
        %p416 = pneg %p415
      $region54: #{tpu_custom_call.1} parent=5 // pred_check_branch
        %418 = sbr.rel (%p416) target = $region56
      $region55: #{tpu_custom_call.1} parent=5 // pred_region
        %s419 = ssub.s32 %s16, 2
        // Predicated region
        $region57: #{tpu_custom_call.1} parent=55 // pred_check
          %p420 = pneg %p148
        $region58: #{tpu_custom_call.1} parent=55 // pred_check_branch
          %422 = sbr.rel (%p420) target = $region60
        $region59: #{tpu_custom_call.1} parent=55 // pred_region
          %s423 = sand.u32 %s133, 1
          %s424 = scalar_lea.sflag [#allocation7], %s423
          %s425 = sand.u32 %s133, 1
          %s426 = smul.addr %s425, 16
          %s427 = scalar_lea.vmem [#allocation8], %s426
          %429 = dma.done %s424, 256
        $region60: #{tpu_custom_call.1} parent=55 // pred_fallthru
          _
      $region56: #{tpu_custom_call.1} parent=5 // pred_fallthru
        _
    $region6: #{tpu_custom_call.1} parent=1 // loop_footer
      %s20 = sadd.s32 1, %s16
    $region7: #{tpu_custom_call.1} parent=1 // loop_footer_branch
      %15 = sbr.rel target = $region3
    $region8: #{tpu_custom_call.1} parent=1 // loop_exit
      _
    %430 = vsyncpa [#allocation6], 1
    %s431 = scalar_lea.sflag [#allocation6], 1
    %432 = vsyncpa %s431, 1
    %433 = vsyncpa [#allocation7], 1
    %s434 = scalar_lea.sflag [#allocation7], 1
    %435 = vsyncpa %s434, 1

</llo_original>
